<compile_context>
chip_gen: v5e
topology: v5e:2x2
jax: 0.10.0
libtpu: 0.0.40
codegen_flags: <defaults>
</compile_context>

<pallas_src>
import functools

import jax
import jax.numpy as jnp
from jax.experimental import pallas as pl
from jax.experimental.pallas import tpu as pltpu


def _round_up(x, m):
    return (x + m - 1) // m * m


def _pad2(a, rows, cols):
    """Zero-pad a 2-D array up to (rows, cols)."""
    out = jnp.zeros((rows, cols), a.dtype)
    return out.at[: a.shape[0], : a.shape[1]].set(a)


def build_shifted_basis(basis_xrd, sample_density, S):
    """M[n*S + s, d] = basis_xrd[n, d + s]  (im2col of the conv2d decode)."""
    N = basis_xrd.shape[0]
    cols = jnp.arange(S)[:, None] + jnp.arange(sample_density)[None, :]   # (S, D)
    windows = basis_xrd[:, cols]                                          # (N, S, D)
    return windows.reshape(N * S, sample_density), windows


def prepare_params(w1, b1, w2, b2, w3, b3, basis_xrd, sample_density, shifts,
                   *, use_bf16=False):
    """One-time model setup: lane-pad weights/biases, build + pad the im2col
    decode matrix, and (optionally) cast MXU operands to bf16.  Done ONCE so
    the per-call forward does no weight padding / casting."""
    S = 2 * shifts + 1
    m, _ = build_shifted_basis(basis_xrd, sample_density, S)

    D = sample_density
    H1, H2, H3 = w1.shape[1], w2.shape[1], w3.shape[1]
    Dp, H1p, H2p, H3p = (_round_up(v, 128) for v in (D, H1, H2, H3))

    w_dtype = jnp.bfloat16 if use_bf16 else jnp.float32
    # Padded bias lanes MUST be zero so ReLU keeps padded lanes at 0.
    return (
        _pad2(w1, Dp, H1p).astype(w_dtype),
        _pad2(b1, 1, H1p).astype(jnp.float32),
        _pad2(w2, H1p, H2p).astype(w_dtype),
        _pad2(b2, 1, H2p).astype(jnp.float32),
        _pad2(w3, H2p, H3p).astype(w_dtype),
        _pad2(b3, 1, H3p).astype(jnp.float32),
        _pad2(m, H3p, Dp).astype(w_dtype),
    )


def _autoencoder_kernel(x_ref, w1_ref, b1_ref, w2_ref, b2_ref, w3_ref, b3_ref,
                        m_ref, out_ref):
    mm_dtype = w1_ref.dtype            # f32 or bf16 MXU operands

    def mm(a, w_ref):
        # MXU matmul; accumulation always f32.
        return jnp.dot(a.astype(mm_dtype), w_ref[...],
                       preferred_element_type=jnp.float32)

    x = x_ref[...]
    # encode: fc1 -> relu -> fc2 -> relu -> fc3 -> relu
    h1 = jnp.maximum(mm(x, w1_ref) + b1_ref[...], 0.0)
    h2 = jnp.maximum(mm(h1, w2_ref) + b2_ref[...], 0.0)
    h3 = jnp.maximum(mm(h2, w3_ref) + b3_ref[...], 0.0)
    # relu(reshape(B,N,S)) then normalize(p=1, dim=(1,2)) == L1-normalize the
    # flat (N*S) block per row.  h3 >= 0 post-ReLU so abs() is dropped, and the
    # per-row scalar commutes with the decode matmul -> apply after it.
    denom = jnp.maximum(jnp.sum(h3, axis=-1, keepdims=True), 1e-12)  # torch eps
    y = mm(h3, m_ref)                  # decode conv2d as im2col matmul
    out_ref[...] = y * pl.reciprocal(denom)   # exact reciprocal, EUP slot


def _pick_tile(B, Dp, H1p, H2p, H3p, w_bytes, batch_tile):
    """Static (trace-time) batch-tile selection with a v7x-safe VMEM budget."""
    Bp = _round_up(B, 8)
    TB = _round_up(min(batch_tile, Bp), 8)
    # v7x has 2 TensorCores: make sure the "parallel" grid has >=2 steps when
    # the batch is big enough to split.
    if Bp >= 16 and (Bp + TB - 1) // TB < 2:
        TB = _round_up((Bp + 1) // 2, 8)

    def vmem_est(tb):
        w = (Dp * H1p + H1p * H2p + H2p * H3p + H3p * Dp) * w_bytes  # 1x buffered
        b = (H1p + H2p + H3p) * 4
        io = 2 * 2 * tb * Dp * 4            # x + out, double-buffered, f32
        act = tb * (H1p + H2p + H3p) * 4    # live f32 intermediates
        return w + b + io + act

    budget = 48 << 20                       # headroom under v7x's 64 MiB VMEM
    while TB > 8 and vmem_est(TB) > budget:
        TB = max(8, _round_up(TB // 2, 8))
    Bp = _round_up(Bp, TB)
    return Bp, TB, vmem_est(TB)


@functools.partial(jax.jit, static_argnames=("batch_tile",))
def autoencoder_forward(x, params, *, batch_tile=256):
    """x: (B, sample_density) -> reconstruction (B, sample_density).
    `params` must come from prepare_params() (pre-padded, pre-cast)."""
    w1p, b1p, w2p, b2p, w3p, b3p, mp = params
    B, D = x.shape
    Dp, H1p = w1p.shape
    H2p = w2p.shape[1]
    H3p = w3p.shape[1]
    w_bytes = jnp.dtype(w1p.dtype).itemsize

    Bp, TB, vmem_est = _pick_tile(B, Dp, H1p, H2p, H3p, w_bytes, batch_tile)
    xp = _pad2(x, Bp, Dp)                   # only per-call pad left: the input

    # Constant-index weight blocks: VMEM-resident and single-buffered.
    resident = lambda shape: pl.BlockSpec(shape, lambda i: (0, 0),
                                          pipeline_mode=pl.Buffered(1))
    io_spec = pl.BlockSpec((TB, Dp), lambda i: (i, 0))

    out = pl.pallas_call(
        _autoencoder_kernel,
        out_shape=jax.ShapeDtypeStruct((Bp, Dp), jnp.float32),
        grid=(Bp // TB,),
        in_specs=[
            io_spec,                        # x: batch-tiled
            resident((Dp, H1p)),            # w1
            resident((1, H1p)),             # b1
            resident((H1p, H2p)),           # w2
            resident((1, H2p)),             # b2
            resident((H2p, H3p)),           # w3
            resident((1, H3p)),             # b3
            resident((H3p, Dp)),            # M (im2col decode)
        ],
        out_specs=io_spec,
        compiler_params=pltpu.CompilerParams(
            dimension_semantics=("parallel",),                # megacore on v7x
            vmem_limit_bytes=min(int(vmem_est * 3 // 2) + (8 << 20), 96 << 20)),
    )(xp, w1p, b1p, w2p, b2p, w3p, b3p, mp)

    return out[:B, :D]


if __name__ == "__main__":
    key = jax.random.PRNGKey(0)

    # Small shapes consistent with the module.
    B = 2                 # batch of XRD patterns (exp_xrd rows)
    D = 128               # sample_density = exp_xrd.shape[1]
    N = 4                 # number of basis phases = basis_xrd.shape[0]
    shifts = 3
    S = 2 * shifts + 1    # shifts*2 + 1
    L = D + S - 1         # basis_xrd length so conv output width == sample_density
    H1, H2, H3 = 40 * N, 20 * N, N * S

    ks = jax.random.split(key, 8)
    x = jax.random.uniform(ks[0], (B, D), jnp.float32)
    basis_xrd = jax.random.uniform(ks[1], (N, L), jnp.float32)
    w1 = 0.05 * jax.random.normal(ks[2], (D, H1), jnp.float32)
    b1 = 0.05 * jax.random.normal(ks[3], (1, H1), jnp.float32)
    w2 = 0.05 * jax.random.normal(ks[4], (H1, H2), jnp.float32)
    b2 = 0.05 * jax.random.normal(ks[5], (1, H2), jnp.float32)
    w3 = 0.05 * jax.random.normal(ks[6], (H2, H3), jnp.float32)
    b3 = 0.05 * jax.random.normal(ks[7], (1, H3), jnp.float32)

    # Pure-JAX reference of the exact PyTorch forward semantics.
    _, windows = build_shifted_basis(basis_xrd, D, S)
    h1 = jnp.maximum(x @ w1 + b1, 0.0)
    h2 = jnp.maximum(h1 @ w2 + b2, 0.0)
    h3 = jnp.maximum(h2 @ w3 + b3, 0.0)
    enc = h3 / jnp.maximum(jnp.sum(jnp.abs(h3), axis=-1, keepdims=True), 1e-12)
    ref = jnp.einsum('bns,nsd->bd', enc.reshape(B, N, S), windows)

    # --- f32 path (exact module semantics) --------------------------------
    params_f32 = prepare_params(w1, b1, w2, b2, w3, b3, basis_xrd, D, shifts,
                                use_bf16=False)
    out = jax.block_until_ready(autoencoder_forward(x, params_f32))
    assert out.shape == (B, D), out.shape
    assert jnp.allclose(out, ref, atol=1e-5, rtol=1e-5), \
        float(jnp.max(jnp.abs(out - ref)))

    # --- bf16 MXU path (perf option; bf16-appropriate tolerance) ----------
    params_bf16 = prepare_params(w1, b1, w2, b2, w3, b3, basis_xrd, D, shifts,
                                 use_bf16=True)
    out_bf = jax.block_until_ready(autoencoder_forward(x, params_bf16))
    assert out_bf.shape == (B, D), out_bf.shape
    assert jnp.all(jnp.isfinite(out_bf))
    assert jnp.allclose(out_bf, ref, atol=5e-2, rtol=5e-2), \
        float(jnp.max(jnp.abs(out_bf - ref)))

    # TODO(synk): cal_*_loss / train / solution are host-side training utilities,
    # not part of forward(); they are intentionally not ported to the kernel.
    print("KERNEL_OK")
</pallas_src>

<mosaic_0001>
module attributes {stable_mosaic.version = 11 : i64} {
  func.func @_autoencoder_kernel(%arg0: i32, %arg1: memref<8x128xf32, #tpu.memory_space<vmem>>, %arg2: memref<128x256xf32, #tpu.memory_space<vmem>>, %arg3: memref<1x256xf32, #tpu.memory_space<vmem>>, %arg4: memref<256x128xf32, #tpu.memory_space<vmem>>, %arg5: memref<1x128xf32, #tpu.memory_space<vmem>>, %arg6: memref<128x128xf32, #tpu.memory_space<vmem>>, %arg7: memref<1x128xf32, #tpu.memory_space<vmem>>, %arg8: memref<128x128xf32, #tpu.memory_space<vmem>>, %arg9: memref<8x128xf32, #tpu.memory_space<vmem>>) attributes {dimension_semantics = [#tpu.dimension_semantics<parallel>], iteration_bounds = array<i64: 1>, scalar_prefetch = 0 : i64, scratch_operands = 0 : i64, tpu.core_type = #tpu.core_type<tc>, window_params = [{transform_indices = @transform_0, window_bounds = array<i64: 8, 128>}, {pipeline_mode = #tpu.pipeline_mode<synchronous>, transform_indices = @transform_1, window_bounds = array<i64: 128, 256>}, {pipeline_mode = #tpu.pipeline_mode<synchronous>, transform_indices = @transform_2, window_bounds = array<i64: 1, 256>}, {pipeline_mode = #tpu.pipeline_mode<synchronous>, transform_indices = @transform_3, window_bounds = array<i64: 256, 128>}, {pipeline_mode = #tpu.pipeline_mode<synchronous>, transform_indices = @transform_4, window_bounds = array<i64: 1, 128>}, {pipeline_mode = #tpu.pipeline_mode<synchronous>, transform_indices = @transform_5, window_bounds = array<i64: 128, 128>}, {pipeline_mode = #tpu.pipeline_mode<synchronous>, transform_indices = @transform_6, window_bounds = array<i64: 1, 128>}, {pipeline_mode = #tpu.pipeline_mode<synchronous>, transform_indices = @transform_7, window_bounds = array<i64: 128, 128>}, {transform_indices = @transform_8, window_bounds = array<i64: 8, 128>}]} {
    %c0 = arith.constant 0 : index
    %c0_0 = arith.constant 0 : index
    %0 = vector.load %arg1[%c0, %c0_0] : memref<8x128xf32, #tpu.memory_space<vmem>>, vector<8x128xf32>
    %c0_1 = arith.constant 0 : index
    %c0_2 = arith.constant 0 : index
    %1 = vector.load %arg2[%c0_1, %c0_2] : memref<128x256xf32, #tpu.memory_space<vmem>>, vector<128x256xf32>
    %cst = arith.constant dense<0.000000e+00> : vector<8x256xf32>
    %2 = tpu.matmul %0, %1, %cst {dimension_numbers = #tpu.dot_dimension_numbers<[1], [0], [0], [1], [0, 0, 1, 1], [], []>} : vector<8x128xf32>, vector<128x256xf32>, vector<8x256xf32> -> vector<8x256xf32>
    %c0_3 = arith.constant 0 : index
    %c0_4 = arith.constant 0 : index
    %3 = vector.load %arg3[%c0_3, %c0_4] : memref<1x256xf32, #tpu.memory_space<vmem>>, vector<1x256xf32>
    %4 = vector.broadcast %3 : vector<1x256xf32> to vector<8x256xf32>
    %5 = arith.addf %2, %4 : vector<8x256xf32>
    %cst_5 = arith.constant 0.000000e+00 : f32
    %6 = vector.broadcast %cst_5 : f32 to vector<8x256xf32>
    %7 = arith.maximumf %5, %6 : vector<8x256xf32>
    %c0_6 = arith.constant 0 : index
    %c0_7 = arith.constant 0 : index
    %8 = vector.load %arg4[%c0_6, %c0_7] : memref<256x128xf32, #tpu.memory_space<vmem>>, vector<256x128xf32>
    %cst_8 = arith.constant dense<0.000000e+00> : vector<8x128xf32>
    %9 = tpu.matmul %7, %8, %cst_8 {dimension_numbers = #tpu.dot_dimension_numbers<[1], [0], [0], [1], [0, 0, 1, 1], [], []>} : vector<8x256xf32>, vector<256x128xf32>, vector<8x128xf32> -> vector<8x128xf32>
    %c0_9 = arith.constant 0 : index
    %c0_10 = arith.constant 0 : index
    %10 = vector.load %arg5[%c0_9, %c0_10] : memref<1x128xf32, #tpu.memory_space<vmem>>, vector<1x128xf32>
    %11 = vector.broadcast %10 : vector<1x128xf32> to vector<8x128xf32>
    %12 = arith.addf %9, %11 : vector<8x128xf32>
    %cst_11 = arith.constant 0.000000e+00 : f32
    %13 = vector.broadcast %cst_11 : f32 to vector<8x128xf32>
    %14 = arith.maximumf %12, %13 : vector<8x128xf32>
    %c0_12 = arith.constant 0 : index
    %c0_13 = arith.constant 0 : index
    %15 = vector.load %arg6[%c0_12, %c0_13] : memref<128x128xf32, #tpu.memory_space<vmem>>, vector<128x128xf32>
    %cst_14 = arith.constant dense<0.000000e+00> : vector<8x128xf32>
    %16 = tpu.matmul %14, %15, %cst_14 {dimension_numbers = #tpu.dot_dimension_numbers<[1], [0], [0], [1], [0, 0, 1, 1], [], []>} : vector<8x128xf32>, vector<128x128xf32>, vector<8x128xf32> -> vector<8x128xf32>
    %c0_15 = arith.constant 0 : index
    %c0_16 = arith.constant 0 : index
    %17 = vector.load %arg7[%c0_15, %c0_16] : memref<1x128xf32, #tpu.memory_space<vmem>>, vector<1x128xf32>
    %18 = vector.broadcast %17 : vector<1x128xf32> to vector<8x128xf32>
    %19 = arith.addf %16, %18 : vector<8x128xf32>
    %cst_17 = arith.constant 0.000000e+00 : f32
    %20 = vector.broadcast %cst_17 : f32 to vector<8x128xf32>
    %21 = arith.maximumf %19, %20 : vector<8x128xf32>
    %cst_18 = arith.constant dense<0.000000e+00> : vector<8xf32>
    %22 = vector.multi_reduction <add>, %21, %cst_18 [1] : vector<8x128xf32> to vector<8xf32>
    %23 = vector.shape_cast %22 : vector<8xf32> to vector<8x1xf32>
    %cst_19 = arith.constant 9.99999996E-13 : f32
    %24 = vector.broadcast %cst_19 : f32 to vector<8x1xf32>
    %25 = arith.maximumf %23, %24 : vector<8x1xf32>
    %c0_20 = arith.constant 0 : index
    %c0_21 = arith.constant 0 : index
    %26 = vector.load %arg8[%c0_20, %c0_21] : memref<128x128xf32, #tpu.memory_space<vmem>>, vector<128x128xf32>
    %cst_22 = arith.constant dense<0.000000e+00> : vector<8x128xf32>
    %27 = tpu.matmul %21, %26, %cst_22 {dimension_numbers = #tpu.dot_dimension_numbers<[1], [0], [0], [1], [0, 0, 1, 1], [], []>} : vector<8x128xf32>, vector<128x128xf32>, vector<8x128xf32> -> vector<8x128xf32>
    %28 = tpu.reciprocal %25 : vector<8x1xf32> -> vector<8x1xf32>
    %29 = vector.broadcast %28 : vector<8x1xf32> to vector<8x128xf32>
    %30 = arith.mulf %27, %29 : vector<8x128xf32>
    %c0_23 = arith.constant 0 : index
    %c0_24 = arith.constant 0 : index
    %31 = vector.load %arg9[%c0_23, %c0_24] : memref<8x128xf32, #tpu.memory_space<vmem>>, vector<8x128xf32>
    tpu.vector_store %arg9[%c0_23, %c0_24], %30 {strides = array<i32>} : memref<8x128xf32, #tpu.memory_space<vmem>>, vector<8x128xf32>,
    return
  }
  func.func @transform_0(%arg0: i32) -> (i32, i32) {
    %c0_i32 = arith.constant 0 : i32
    %c0_i32_0 = arith.constant 0 : i32
    return %arg0, %c0_i32 : i32, i32
  }
  func.func @transform_1(%arg0: i32) -> (i32, i32) {
    %c0_i32 = arith.constant 0 : i32
    %c0_i32_0 = arith.constant 0 : i32
    %c0_i32_1 = arith.constant 0 : i32
    return %c0_i32, %c0_i32_0 : i32, i32
  }
  func.func @transform_2(%arg0: i32) -> (i32, i32) {
    %c0_i32 = arith.constant 0 : i32
    %c0_i32_0 = arith.constant 0 : i32
    %c0_i32_1 = arith.constant 0 : i32
    return %c0_i32, %c0_i32_0 : i32, i32
  }
  func.func @transform_3(%arg0: i32) -> (i32, i32) {
    %c0_i32 = arith.constant 0 : i32
    %c0_i32_0 = arith.constant 0 : i32
    %c0_i32_1 = arith.constant 0 : i32
    return %c0_i32, %c0_i32_0 : i32, i32
  }
  func.func @transform_4(%arg0: i32) -> (i32, i32) {
    %c0_i32 = arith.constant 0 : i32
    %c0_i32_0 = arith.constant 0 : i32
    %c0_i32_1 = arith.constant 0 : i32
    return %c0_i32, %c0_i32_0 : i32, i32
  }
  func.func @transform_5(%arg0: i32) -> (i32, i32) {
    %c0_i32 = arith.constant 0 : i32
    %c0_i32_0 = arith.constant 0 : i32
    %c0_i32_1 = arith.constant 0 : i32
    return %c0_i32, %c0_i32_0 : i32, i32
  }
  func.func @transform_6(%arg0: i32) -> (i32, i32) {
    %c0_i32 = arith.constant 0 : i32
    %c0_i32_0 = arith.constant 0 : i32
    %c0_i32_1 = arith.constant 0 : i32
    return %c0_i32, %c0_i32_0 : i32, i32
  }
  func.func @transform_7(%arg0: i32) -> (i32, i32) {
    %c0_i32 = arith.constant 0 : i32
    %c0_i32_0 = arith.constant 0 : i32
    %c0_i32_1 = arith.constant 0 : i32
    return %c0_i32, %c0_i32_0 : i32, i32
  }
  func.func @transform_8(%arg0: i32) -> (i32, i32) {
    %c0_i32 = arith.constant 0 : i32
    %c0_i32_0 = arith.constant 0 : i32
    return %arg0, %c0_i32 : i32, i32
  }
}

</mosaic_0001>

<llo_original>
// kernel: autoencoder_forward.1
$region0: #{autoencoder_forward.1}
  #allocation0 [shape = 'u32[]', space=smem, size = 0x4, offset = 0x4, fixed_abs, tag = 'smem constant byte address 0x4 - core index']
  #allocation1 [shape = 'u32[72,128]{1,0:T(1,128)}', space=vmem, size = 0x9000, scoped, tag = 'internal scratch']
  %s0 = inlined_call_operand.vmem [shape: f32[8,128], index: 0, kind: input, shape index: {}]
  %s1 = inlined_call_operand.hbm [shape: f32[128,256], index: 1, kind: input, shape index: {}]
  %s2 = inlined_call_operand.vmem [shape: f32[1,256], index: 2, kind: input, shape index: {}]
  %s3 = inlined_call_operand.hbm [shape: f32[256,128], index: 3, kind: input, shape index: {}]
  %s4 = inlined_call_operand.vmem [shape: f32[1,128], index: 4, kind: input, shape index: {}]
  %s5 = inlined_call_operand.hbm [shape: f32[128,128], index: 5, kind: input, shape index: {}]
  %s6 = inlined_call_operand.vmem [shape: f32[1,128], index: 6, kind: input, shape index: {}]
  %s7 = inlined_call_operand.hbm [shape: f32[128,128], index: 7, kind: input, shape index: {}]
  %s8 = inlined_call_operand.vmem [shape: f32[8,128], index: 8, kind: output, shape index: {}]
  %s9 = sld [smem:[#allocation0]]
  $region58: #{autoencoder_forward.1} parent=0
    _
  %s11 = ssub.s32 1, %s9
  %s12 = scalar_select 0, %s11, %s9
  $region1: #{autoencoder_forward.1} parent=0
    #allocation2 [shape = 'u8[131072]{0}', space=vmem, size = 0x20000, scoped, tag = 'input window, operand 1, single buffered']
    #allocation3 [shape = 's32[1]{0}', space=sflag, size = 0x4, scoped, tag = 'scoped memory for autoencoder_forward.1']
    #allocation4 [shape = 'u8[131072]{0}', space=vmem, size = 0x20000, scoped, tag = 'input window, operand 3, single buffered']
    #allocation5 [shape = 's32[1]{0}', space=sflag, size = 0x4, scoped, tag = 'scoped memory for autoencoder_forward.1']
    #allocation6 [shape = 'u8[65536]{0}', space=vmem, size = 0x10000, scoped, tag = 'input window, operand 5, single buffered']
    #allocation7 [shape = 'u8[65536]{0}', space=vmem, size = 0x10000, scoped, tag = 'input window, operand 7, single buffered']
    #allocation8 [shape = 's32[1]{0}', space=sflag, size = 0x4, scoped, tag = 'scoped memory for autoencoder_forward.1']
    %13 = vsyncpa [#allocation3], 0
    %14 = vsyncpa [#allocation5], 0
    %15 = vsyncpa [#allocation8], 0
    // Predicated region
    $region2: #{autoencoder_forward.1} parent=1 // pred_check
      _
    $region3: #{autoencoder_forward.1} parent=1 // pred_check_branch
      %17 = sbr.rel (0) target = $region5
    $region4: #{autoencoder_forward.1} parent=1 // pred_region
      _
    $region5: #{autoencoder_forward.1} parent=1 // pred_fallthru
      _
    // Predicated region
    $region6: #{autoencoder_forward.1} parent=1 // pred_check
      _
    $region7: #{autoencoder_forward.1} parent=1 // pred_check_branch
      %19 = sbr.rel (0) target = $region9
    $region8: #{autoencoder_forward.1} parent=1 // pred_region
      %21 = vsyncadd [#allocation3], 0
      %s22 = sshll.u32 %s1, 4
      %s23 = int_to_ptr.hbm [resolvable:$true] %s22
      %s24 = sshll.u32 [#allocation2], 4
      %s25 = int_to_ptr.vmem [resolvable:$true] %s24
      %30 = dma.hbm_to_vmem [thread:$0]  %s23, 4096, %s25, [#allocation3], 256, 256, 16
    $region9: #{autoencoder_forward.1} parent=1 // pred_fallthru
      _
    // Predicated region
    $region10: #{autoencoder_forward.1} parent=1 // pred_check
      _
    $region11: #{autoencoder_forward.1} parent=1 // pred_check_branch
      %32 = sbr.rel (0) target = $region13
    $region12: #{autoencoder_forward.1} parent=1 // pred_region
      _
    $region13: #{autoencoder_forward.1} parent=1 // pred_fallthru
      _
    // Predicated region
    $region14: #{autoencoder_forward.1} parent=1 // pred_check
      _
    $region15: #{autoencoder_forward.1} parent=1 // pred_check_branch
      %34 = sbr.rel (0) target = $region17
    $region16: #{autoencoder_forward.1} parent=1 // pred_region
      %36 = vsyncadd [#allocation5], 0
      %s37 = sshll.u32 %s3, 4
      %s38 = int_to_ptr.hbm [resolvable:$true] %s37
      %s39 = sshll.u32 [#allocation4], 4
      %s40 = int_to_ptr.vmem [resolvable:$true] %s39
      %45 = dma.hbm_to_vmem [thread:$0]  %s38, 4096, %s40, [#allocation5], 128, 128, 8
    $region17: #{autoencoder_forward.1} parent=1 // pred_fallthru
      _
    // Predicated region
    $region18: #{autoencoder_forward.1} parent=1 // pred_check
      _
    $region19: #{autoencoder_forward.1} parent=1 // pred_check_branch
      %47 = sbr.rel (0) target = $region21
    $region20: #{autoencoder_forward.1} parent=1 // pred_region
      _
    $region21: #{autoencoder_forward.1} parent=1 // pred_fallthru
      _
    // Predicated region
    $region22: #{autoencoder_forward.1} parent=1 // pred_check
      _
    $region23: #{autoencoder_forward.1} parent=1 // pred_check_branch
      %49 = sbr.rel (0) target = $region25
    $region24: #{autoencoder_forward.1} parent=1 // pred_region
      %51 = vsyncadd [#allocation5], 0
      %s52 = sshll.u32 %s5, 4
      %s53 = int_to_ptr.hbm [resolvable:$true] %s52
      %s54 = sshll.u32 [#allocation6], 4
      %s55 = int_to_ptr.vmem [resolvable:$true] %s54
      %60 = dma.hbm_to_vmem [thread:$0]  %s53, 2048, %s55, [#allocation5], 128, 128, 8
    $region25: #{autoencoder_forward.1} parent=1 // pred_fallthru
      _
    // Predicated region
    $region26: #{autoencoder_forward.1} parent=1 // pred_check
      _
    $region27: #{autoencoder_forward.1} parent=1 // pred_check_branch
      %62 = sbr.rel (0) target = $region29
    $region28: #{autoencoder_forward.1} parent=1 // pred_region
      _
    $region29: #{autoencoder_forward.1} parent=1 // pred_fallthru
      _
    // Predicated region
    $region30: #{autoencoder_forward.1} parent=1 // pred_check
      _
    $region31: #{autoencoder_forward.1} parent=1 // pred_check_branch
      %64 = sbr.rel (0) target = $region33
    $region32: #{autoencoder_forward.1} parent=1 // pred_region
      %66 = vsyncadd [#allocation8], 0
      %s67 = sshll.u32 %s7, 4
      %s68 = int_to_ptr.hbm [resolvable:$true] %s67
      %s69 = sshll.u32 [#allocation7], 4
      %s70 = int_to_ptr.vmem [resolvable:$true] %s69
      %75 = dma.hbm_to_vmem [thread:$0]  %s68, 2048, %s70, [#allocation8], 128, 128, 8
    $region33: #{autoencoder_forward.1} parent=1 // pred_fallthru
      _
    // Predicated region
    $region34: #{autoencoder_forward.1} parent=1 // pred_check
      _
    $region35: #{autoencoder_forward.1} parent=1 // pred_check_branch
      %77 = sbr.rel (0) target = $region37
    $region36: #{autoencoder_forward.1} parent=1 // pred_region
      %79 = dma.done [#allocation3], 4096
    $region37: #{autoencoder_forward.1} parent=1 // pred_fallthru
      _
    // Predicated region
    $region38: #{autoencoder_forward.1} parent=1 // pred_check
      _
    $region39: #{autoencoder_forward.1} parent=1 // pred_check_branch
      %81 = sbr.rel (0) target = $region41
    $region40: #{autoencoder_forward.1} parent=1 // pred_region
      %83 = dma.done [#allocation5], 4096
    $region41: #{autoencoder_forward.1} parent=1 // pred_fallthru
      _
    // Predicated region
    $region42: #{autoencoder_forward.1} parent=1 // pred_check
      _
    $region43: #{autoencoder_forward.1} parent=1 // pred_check_branch
      %85 = sbr.rel (0) target = $region45
    $region44: #{autoencoder_forward.1} parent=1 // pred_region
      %87 = dma.done [#allocation5], 2048
    $region45: #{autoencoder_forward.1} parent=1 // pred_fallthru
      _
    // Predicated region
    $region46: #{autoencoder_forward.1} parent=1 // pred_check
      _
    $region47: #{autoencoder_forward.1} parent=1 // pred_check_branch
      %89 = sbr.rel (0) target = $region49
    $region48: #{autoencoder_forward.1} parent=1 // pred_region
      %91 = dma.done [#allocation8], 2048
    $region49: #{autoencoder_forward.1} parent=1 // pred_fallthru
      _
    %v92 = vld [vmem:[%s0] sm:$0xff]
    %v93 = vld [vmem:[#allocation2] sm:$0xff]
    %v94 = vld [vmem:[#allocation2 + $0x8] sm:$0xff]
    %v95 = vld [vmem:[#allocation2 + $0x10] sm:$0xff]
    %v96 = vld [vmem:[#allocation2 + $0x18] sm:$0xff]
    %v97 = vld [vmem:[#allocation2 + $0x20] sm:$0xff]
    %v98 = vld [vmem:[#allocation2 + $0x28] sm:$0xff]
    %v99 = vld [vmem:[#allocation2 + $0x30] sm:$0xff]
    %v100 = vld [vmem:[#allocation2 + $0x38] sm:$0xff]
    %v101 = vld [vmem:[#allocation2 + $0x40] sm:$0xff]
    %v102 = vld [vmem:[#allocation2 + $0x48] sm:$0xff]
    %v103 = vld [vmem:[#allocation2 + $0x50] sm:$0xff]
    %v104 = vld [vmem:[#allocation2 + $0x58] sm:$0xff]
    %v105 = vld [vmem:[#allocation2 + $0x60] sm:$0xff]
    %v106 = vld [vmem:[#allocation2 + $0x68] sm:$0xff]
    %v107 = vld [vmem:[#allocation2 + $0x70] sm:$0xff]
    %v108 = vld [vmem:[#allocation2 + $0x78] sm:$0xff]
    %v109 = vld [vmem:[#allocation2 + $0x80] sm:$0xff]
    %v110 = vld [vmem:[#allocation2 + $0x88] sm:$0xff]
    %v111 = vld [vmem:[#allocation2 + $0x90] sm:$0xff]
    %v112 = vld [vmem:[#allocation2 + $0x98] sm:$0xff]
    %v113 = vld [vmem:[#allocation2 + $0xa0] sm:$0xff]
    %v114 = vld [vmem:[#allocation2 + $0xa8] sm:$0xff]
    %v115 = vld [vmem:[#allocation2 + $0xb0] sm:$0xff]
    %v116 = vld [vmem:[#allocation2 + $0xb8] sm:$0xff]
    %v117 = vld [vmem:[#allocation2 + $0xc0] sm:$0xff]
    %v118 = vld [vmem:[#allocation2 + $0xc8] sm:$0xff]
    %v119 = vld [vmem:[#allocation2 + $0xd0] sm:$0xff]
    %v120 = vld [vmem:[#allocation2 + $0xd8] sm:$0xff]
    %v121 = vld [vmem:[#allocation2 + $0xe0] sm:$0xff]
    %v122 = vld [vmem:[#allocation2 + $0xe8] sm:$0xff]
    %v123 = vld [vmem:[#allocation2 + $0xf0] sm:$0xff]
    %v124 = vld [vmem:[#allocation2 + $0xf8] sm:$0xff]
    %v125 = vld [vmem:[%s2] sm:$0x3]
    %v127 = vperm.slane %v125, 0
    %v128 = vperm.slane %v125, 1
    %131 = vmatpush.msra.mxu0 %v123
    %132 = vmatpush.msra.mxu0 %v121
    %133 = vmatpush.msra.mxu0 %v119
    %134 = vmatpush.msra.mxu0 %v117
    %135 = vmatpush.msra.mxu0 %v115
    %136 = vmatpush.msra.mxu0 %v113
    %137 = vmatpush.msra.mxu0 %v111
    %138 = vmatpush.msra.mxu0 %v109
    %139 = vmatpush.msra.mxu0 %v107
    %140 = vmatpush.msra.mxu0 %v105
    %141 = vmatpush.msra.mxu0 %v103
    %142 = vmatpush.msra.mxu0 %v101
    %143 = vmatpush.msra.mxu0 %v99
    %144 = vmatpush.msra.mxu0 %v97
    %145 = vmatpush.msra.mxu0 %v95
    %146 = vmatpush.msra.mxu0 %v93
    %147 = vmatmul.f32.gmra.mxu0 %v92
    %v148 = vpop.f32.mrf.mxu0
    %v149 = vadd.f32 %v127, %v148
    %150 = vdwg.mxu0
    %151 = vmatpush.msra.mxu0 %v124
    %152 = vmatpush.msra.mxu0 %v122
    %153 = vmatpush.msra.mxu0 %v120
    %154 = vmatpush.msra.mxu0 %v118
    %155 = vmatpush.msra.mxu0 %v116
    %156 = vmatpush.msra.mxu0 %v114
    %157 = vmatpush.msra.mxu0 %v112
    %158 = vmatpush.msra.mxu0 %v110
    %159 = vmatpush.msra.mxu0 %v108
    %160 = vmatpush.msra.mxu0 %v106
    %161 = vmatpush.msra.mxu0 %v104
    %162 = vmatpush.msra.mxu0 %v102
    %163 = vmatpush.msra.mxu0 %v100
    %164 = vmatpush.msra.mxu0 %v98
    %165 = vmatpush.msra.mxu0 %v96
    %166 = vmatpush.msra.mxu0 %v94
    %167 = vmatmul.f32.gmra.mxu0 %v92
    %v168 = vpop.f32.mrf.mxu0
    %v169 = vadd.f32 %v128, %v168
    %170 = vdwg.mxu0
    %v171 = vmax.f32 %v149, 0.0
    %v172 = vmax.f32 %v169, 0.0
    %v173 = vld [vmem:[#allocation4] sm:$0xff]
    %v174 = vld [vmem:[#allocation4 + $0x8] sm:$0xff]
    %v175 = vld [vmem:[#allocation4 + $0x10] sm:$0xff]
    %v176 = vld [vmem:[#allocation4 + $0x18] sm:$0xff]
    %v177 = vld [vmem:[#allocation4 + $0x20] sm:$0xff]
    %v178 = vld [vmem:[#allocation4 + $0x28] sm:$0xff]
    %v179 = vld [vmem:[#allocation4 + $0x30] sm:$0xff]
    %v180 = vld [vmem:[#allocation4 + $0x38] sm:$0xff]
    %v181 = vld [vmem:[#allocation4 + $0x40] sm:$0xff]
    %v182 = vld [vmem:[#allocation4 + $0x48] sm:$0xff]
    %v183 = vld [vmem:[#allocation4 + $0x50] sm:$0xff]
    %v184 = vld [vmem:[#allocation4 + $0x58] sm:$0xff]
    %v185 = vld [vmem:[#allocation4 + $0x60] sm:$0xff]
    %v186 = vld [vmem:[#allocation4 + $0x68] sm:$0xff]
    %v187 = vld [vmem:[#allocation4 + $0x70] sm:$0xff]
    %v188 = vld [vmem:[#allocation4 + $0x78] sm:$0xff]
    %v189 = vld [vmem:[#allocation4 + $0x80] sm:$0xff]
    %v190 = vld [vmem:[#allocation4 + $0x88] sm:$0xff]
    %v191 = vld [vmem:[#allocation4 + $0x90] sm:$0xff]
    %v192 = vld [vmem:[#allocation4 + $0x98] sm:$0xff]
    %v193 = vld [vmem:[#allocation4 + $0xa0] sm:$0xff]
    %v194 = vld [vmem:[#allocation4 + $0xa8] sm:$0xff]
    %v195 = vld [vmem:[#allocation4 + $0xb0] sm:$0xff]
    %v196 = vld [vmem:[#allocation4 + $0xb8] sm:$0xff]
    %v197 = vld [vmem:[#allocation4 + $0xc0] sm:$0xff]
    %v198 = vld [vmem:[#allocation4 + $0xc8] sm:$0xff]
    %v199 = vld [vmem:[#allocation4 + $0xd0] sm:$0xff]
    %v200 = vld [vmem:[#allocation4 + $0xd8] sm:$0xff]
    %v201 = vld [vmem:[#allocation4 + $0xe0] sm:$0xff]
    %v202 = vld [vmem:[#allocation4 + $0xe8] sm:$0xff]
    %v203 = vld [vmem:[#allocation4 + $0xf0] sm:$0xff]
    %v204 = vld [vmem:[#allocation4 + $0xf8] sm:$0xff]
    %v205 = vld [vmem:[%s4] sm:$0x1]
    %v207 = vperm.slane %v205, 0
    %209 = vmatpush.msra.mxu0 %v188
    %210 = vmatpush.msra.mxu0 %v187
    %211 = vmatpush.msra.mxu0 %v186
    %212 = vmatpush.msra.mxu0 %v185
    %213 = vmatpush.msra.mxu0 %v184
    %214 = vmatpush.msra.mxu0 %v183
    %215 = vmatpush.msra.mxu0 %v182
    %216 = vmatpush.msra.mxu0 %v181
    %217 = vmatpush.msra.mxu0 %v180
    %218 = vmatpush.msra.mxu0 %v179
    %219 = vmatpush.msra.mxu0 %v178
    %220 = vmatpush.msra.mxu0 %v177
    %221 = vmatpush.msra.mxu0 %v176
    %222 = vmatpush.msra.mxu0 %v175
    %223 = vmatpush.msra.mxu0 %v174
    %224 = vmatpush.msra.mxu0 %v173
    %225 = vmatmul.f32.gmra.mxu0 %v171
    %v226 = vpop.f32.mrf.mxu0
    %v227 = vadd.f32 %v207, %v226
    %228 = vdwg.mxu0
    %229 = vmatpush.msra.mxu0 %v204
    %230 = vmatpush.msra.mxu0 %v203
    %231 = vmatpush.msra.mxu0 %v202
    %232 = vmatpush.msra.mxu0 %v201
    %233 = vmatpush.msra.mxu0 %v200
    %234 = vmatpush.msra.mxu0 %v199
    %235 = vmatpush.msra.mxu0 %v198
    %236 = vmatpush.msra.mxu0 %v197
    %237 = vmatpush.msra.mxu0 %v196
    %238 = vmatpush.msra.mxu0 %v195
    %239 = vmatpush.msra.mxu0 %v194
    %240 = vmatpush.msra.mxu0 %v193
    %241 = vmatpush.msra.mxu0 %v192
    %242 = vmatpush.msra.mxu0 %v191
    %243 = vmatpush.msra.mxu0 %v190
    %244 = vmatpush.msra.mxu0 %v189
    %245 = vmatmul.f32.gmra.mxu0 %v172
    %v246 = vpop.f32.mrf.mxu0
    %v247 = vadd.f32 %v227, %v246
    %248 = vdwg.mxu0
    %v249 = vmax.f32 %v247, 0.0
    %v250 = vld [vmem:[#allocation6] sm:$0xff]
    %v251 = vld [vmem:[#allocation6 + $0x8] sm:$0xff]
    %v252 = vld [vmem:[#allocation6 + $0x10] sm:$0xff]
    %v253 = vld [vmem:[#allocation6 + $0x18] sm:$0xff]
    %v254 = vld [vmem:[#allocation6 + $0x20] sm:$0xff]
    %v255 = vld [vmem:[#allocation6 + $0x28] sm:$0xff]
    %v256 = vld [vmem:[#allocation6 + $0x30] sm:$0xff]
    %v257 = vld [vmem:[#allocation6 + $0x38] sm:$0xff]
    %v258 = vld [vmem:[#allocation6 + $0x40] sm:$0xff]
    %v259 = vld [vmem:[#allocation6 + $0x48] sm:$0xff]
    %v260 = vld [vmem:[#allocation6 + $0x50] sm:$0xff]
    %v261 = vld [vmem:[#allocation6 + $0x58] sm:$0xff]
    %v262 = vld [vmem:[#allocation6 + $0x60] sm:$0xff]
    %v263 = vld [vmem:[#allocation6 + $0x68] sm:$0xff]
    %v264 = vld [vmem:[#allocation6 + $0x70] sm:$0xff]
    %v265 = vld [vmem:[#allocation6 + $0x78] sm:$0xff]
    %v266 = vld [vmem:[%s6] sm:$0x1]
    %v268 = vperm.slane %v266, 0
    %270 = vmatpush.msra.mxu0 %v265
    %271 = vmatpush.msra.mxu0 %v264
    %272 = vmatpush.msra.mxu0 %v263
    %273 = vmatpush.msra.mxu0 %v262
    %274 = vmatpush.msra.mxu0 %v261
    %275 = vmatpush.msra.mxu0 %v260
    %276 = vmatpush.msra.mxu0 %v259
    %277 = vmatpush.msra.mxu0 %v258
    %278 = vmatpush.msra.mxu0 %v257
    %279 = vmatpush.msra.mxu0 %v256
    %280 = vmatpush.msra.mxu0 %v255
    %281 = vmatpush.msra.mxu0 %v254
    %282 = vmatpush.msra.mxu0 %v253
    %283 = vmatpush.msra.mxu0 %v252
    %284 = vmatpush.msra.mxu0 %v251
    %285 = vmatpush.msra.mxu0 %v250
    %286 = vmatmul.f32.gmra.mxu0 %v249
    %v287 = vpop.f32.mrf.mxu0
    %v288 = vadd.f32 %v268, %v287
    %289 = vdwg.mxu0
    %v290 = vmax.f32 %v288, 0.0
    %291 = vadd.xlane.f32.xlu0 %v290
    %v292 = vpop.xlane.xlu0 %291
    %v293 = vmax.f32 %v292, 1e-12
    %v294 = vld [vmem:[#allocation7] sm:$0xff]
    %v295 = vld [vmem:[#allocation7 + $0x8] sm:$0xff]
    %v296 = vld [vmem:[#allocation7 + $0x10] sm:$0xff]
    %v297 = vld [vmem:[#allocation7 + $0x18] sm:$0xff]
    %v298 = vld [vmem:[#allocation7 + $0x20] sm:$0xff]
    %v299 = vld [vmem:[#allocation7 + $0x28] sm:$0xff]
    %v300 = vld [vmem:[#allocation7 + $0x30] sm:$0xff]
    %v301 = vld [vmem:[#allocation7 + $0x38] sm:$0xff]
    %v302 = vld [vmem:[#allocation7 + $0x40] sm:$0xff]
    %v303 = vld [vmem:[#allocation7 + $0x48] sm:$0xff]
    %v304 = vld [vmem:[#allocation7 + $0x50] sm:$0xff]
    %v305 = vld [vmem:[#allocation7 + $0x58] sm:$0xff]
    %v306 = vld [vmem:[#allocation7 + $0x60] sm:$0xff]
    %v307 = vld [vmem:[#allocation7 + $0x68] sm:$0xff]
    %v308 = vld [vmem:[#allocation7 + $0x70] sm:$0xff]
    %v309 = vld [vmem:[#allocation7 + $0x78] sm:$0xff]
    %310 = vmatpush.msra.mxu0 %v309
    %311 = vmatpush.msra.mxu0 %v308
    %312 = vmatpush.msra.mxu0 %v307
    %313 = vmatpush.msra.mxu0 %v306
    %314 = vmatpush.msra.mxu0 %v305
    %315 = vmatpush.msra.mxu0 %v304
    %316 = vmatpush.msra.mxu0 %v303
    %317 = vmatpush.msra.mxu0 %v302
    %318 = vmatpush.msra.mxu0 %v301
    %319 = vmatpush.msra.mxu0 %v300
    %320 = vmatpush.msra.mxu0 %v299
    %321 = vmatpush.msra.mxu0 %v298
    %322 = vmatpush.msra.mxu0 %v297
    %323 = vmatpush.msra.mxu0 %v296
    %324 = vmatpush.msra.mxu0 %v295
    %325 = vmatpush.msra.mxu0 %v294
    %326 = vmatmul.f32.gmra.mxu0 %v290
    %v327 = vpop.f32.mrf.mxu0
    %v328 = vadd.f32 0.0, %v327
    %329 = vdwg.mxu0
    %v330 = vrcp.pop %v293
    %v331 = vmul.f32 %v293, %v330
    %v332 = vsub.f32 1.0, %v331
    %v333 = vmul.f32 %v330, %v332
    %v334 = vadd.f32 %v330, %v333
    %vm335 = vweird.f32 %v293
    %vm336 = vweird.f32 %v330
    %vm337 = vmor %vm335, %vm336
    %v338 = vsel %vm337, %v330, %v334
    %v339 = vand.u32 2147483647, %v293
    %vm340 = vcmp.eq.f32.partialorder %v339, 8.507059e+37
    %v341 = vand.u32 %v293, 2147483648
    %v342 = vor.u32 1.1754944e-38, %v341
    %v343 = vsel %vm340, %v342, %v338
    %v344 = vmul.f32 %v328, %v343
    %345 = vst [vmem:[%s8] sm:$0xff] %v344
    // Predicated region
    $region50: #{autoencoder_forward.1} parent=1 // pred_check
      _
    $region51: #{autoencoder_forward.1} parent=1 // pred_check_branch
      %347 = sbr.rel (0) target = $region53
    $region52: #{autoencoder_forward.1} parent=1 // pred_region
      _
    $region53: #{autoencoder_forward.1} parent=1 // pred_fallthru
      _
    // Predicated region
    $region54: #{autoencoder_forward.1} parent=1 // pred_check
      _
    $region55: #{autoencoder_forward.1} parent=1 // pred_check_branch
      %349 = sbr.rel (0) target = $region57
    $region56: #{autoencoder_forward.1} parent=1 // pred_region
      _
    $region57: #{autoencoder_forward.1} parent=1 // pred_fallthru
      _
    %350 = vsyncpa [#allocation3], 1
    %351 = vsyncpa [#allocation5], 1
    %352 = vsyncpa [#allocation8], 1

</llo_original>
